<compile_context>
chip_gen: v7x
topology: tpu7x:2x2x1
jax: 0.10.0
libtpu: 0.0.40
codegen_flags: <defaults>
</compile_context>

<pallas_src>
import jax
import jax.numpy as jnp
from jax import lax
from jax.experimental import pallas as pl
from jax.experimental.pallas import tpu as pltpu


def linear_kernel(x_ref, w_ref, b_ref, y_ref, acc_ref):
    """One (tm, tn) tile of y = x @ W_t + b, accumulated over the K grid axis."""
    k = pl.program_id(2)

    @pl.when(k == 0)
    def _init():
        acc_ref[...] = jnp.zeros_like(acc_ref)

    # x_ref: (tm, tk), w_ref: (tk, tn)  -> MXU-natural (m,k)x(k,n) contraction.
    acc_ref[...] += jnp.dot(
        x_ref[...], w_ref[...], preferred_element_type=jnp.float32
    )

    @pl.when(k == pl.num_programs(2) - 1)
    def _finalize():
        # Bias added exactly once, in f32, at the final reduction step.
        y_ref[...] = (acc_ref[...] + b_ref[...].astype(jnp.float32)).astype(y_ref.dtype)


def _round_up(x, m):
    return ((x + m - 1) // m) * m


def _plan_dim(dim, candidates):
    """Return (padded_dim, tile).

    If dim is at most the smallest candidate, one full-extent block is used
    (always legal, bounded VMEM).  Otherwise the dim is padded up to a multiple
    of the smallest candidate and the largest evenly-dividing candidate is the
    tile, so tiles never blow up for awkward (non-divisible) sizes.
    """
    smallest = candidates[-1]
    if dim <= smallest:
        return dim, dim
    p = _round_up(dim, smallest)
    for c in candidates:
        if p % c == 0:
            return p, c
    return p, smallest  # unreachable: p is a multiple of `smallest`


def linear_pallas(x, w_t, b):
    """y = x @ w_t + b via a tiled Pallas kernel. x: (M, K), w_t: (K, N), b: (N,)."""
    M, K = x.shape
    Kw, N = w_t.shape
    assert K == Kw

    M_pad, tm = _plan_dim(M, (256, 128))
    N_pad, tn = _plan_dim(N, (256, 128))          # tn capped at 256 (MXU-sized, splits N)
    K_pad, tk = _plan_dim(K, (512, 256, 128))

    # v7x: keep at least one parallel grid axis with extent >= 2 when possible so
    # the second TensorCore is not idle.  No-op on v5e/v6e (single TC).
    if (M_pad // tm) == 1 and (N_pad // tn) == 1 and tn % 256 == 0:
        tn //= 2

    # Zero-pad inputs to the planned (tile-divisible) shapes; padding K with zeros
    # does not change the result, and padded rows/cols of y are sliced off below.
    if (M_pad, K_pad) != (M, K):
        x = jnp.pad(x, ((0, M_pad - M), (0, K_pad - K)))
    if (K_pad, N_pad) != (K, N):
        w_t = jnp.pad(w_t, ((0, K_pad - K), (0, N_pad - N)))
    if N_pad != N:
        b = jnp.pad(b, (0, N_pad - N))

    grid = (M_pad // tm, N_pad // tn, K_pad // tk)

    # Scoped-VMEM budget derived from the chosen tiles (double-buffered inputs +
    # output block + f32 accumulator), floored at the usual 32 MiB default.
    tile_bytes = 4 * (2 * (tm * tk + tk * tn + tn) + 2 * tm * tn + tm * tn)
    vmem_limit = min(64 * 1024 * 1024, max(32 * 1024 * 1024, 2 * tile_bytes))

    y_pad = pl.pallas_call(
        linear_kernel,
        out_shape=jax.ShapeDtypeStruct((M_pad, N_pad), x.dtype),
        grid_spec=pltpu.PrefetchScalarGridSpec(
            num_scalar_prefetch=0,
            grid=grid,
            in_specs=[
                pl.BlockSpec((tm, tk), lambda i, j, k: (i, k)),  # x tile
                pl.BlockSpec((tk, tn), lambda i, j, k: (k, j)),  # W^T tile (K, N)
                pl.BlockSpec((1, tn), lambda i, j, k: (0, j)),   # bias tile (const over i, k)
            ],
            out_specs=pl.BlockSpec((tm, tn), lambda i, j, k: (i, j)),
            scratch_shapes=[pltpu.VMEM((tm, tn), jnp.float32)],
        ),
        compiler_params=pltpu.CompilerParams(
            dimension_semantics=("parallel", "parallel", "arbitrary"),
            vmem_limit_bytes=vmem_limit,
        ),
    )(x, w_t, b.reshape(1, N_pad))

    if (M_pad, N_pad) != (M, N):
        y_pad = y_pad[:M, :N]
    return y_pad


def model_forward(x, w, b):
    """Full module forward: Linear, then interleave with zeros along features."""
    # One-time XLA transpose: kernel consumes the MXU-natural (K, N) weight layout.
    y = linear_pallas(x, jnp.transpose(w), b)                    # (M, N)
    # Pure layout step: out[:, 2i] = y[:, i], out[:, 2i+1] = 0
    # (== torch.stack([y, zeros], dim=2).flatten(1)), one interior-dilated pad.
    zero = jnp.array(0, dtype=y.dtype)
    return lax.pad(y, zero, ((0, 0, 0), (0, 1, 1)))              # (M, 2N)


def _reference(x, w, b):
    y = jnp.dot(x, w.T, precision=lax.Precision.HIGHEST) + b
    return jnp.stack([y, jnp.zeros_like(y)], axis=2).reshape(x.shape[0], -1)


if __name__ == "__main__":
    key = jax.random.PRNGKey(0)

    # --- Shapes implied by the module: x = (2, 2), Linear(2, 2) ---
    kx, kw, kb = jax.random.split(key, 3)
    x = jax.random.normal(kx, (2, 2), dtype=jnp.float32)
    bound = 1.0 / jnp.sqrt(2.0)
    w = jax.random.uniform(kw, (2, 2), minval=-bound, maxval=bound, dtype=jnp.float32)
    b = jax.random.uniform(kb, (2,), minval=-bound, maxval=bound, dtype=jnp.float32)

    out = model_forward(x, w, b)
    jax.block_until_ready(out)

    ref = _reference(x, w, b)
    assert out.shape == (2, 4), out.shape
    assert jnp.allclose(out, ref, atol=1e-5, rtol=1e-5), (out, ref)

    # --- Larger sanity check: exercises the tiled grid, K-accumulation, padding ---
    k2x, k2w, k2b = jax.random.split(jax.random.PRNGKey(1), 3)
    M2, K2, N2 = 128, 1024, 512
    x2 = jax.random.normal(k2x, (M2, K2), dtype=jnp.float32)
    w2 = jax.random.normal(k2w, (N2, K2), dtype=jnp.float32) * 0.02
    b2 = jax.random.normal(k2b, (N2,), dtype=jnp.float32)

    out2 = model_forward(x2, w2, b2)
    jax.block_until_ready(out2)
    ref2 = _reference(x2, w2, b2)
    assert out2.shape == (M2, 2 * N2), out2.shape
    assert jnp.allclose(out2, ref2, rtol=2e-2, atol=1e-1), float(jnp.max(jnp.abs(out2 - ref2)))

    print("KERNEL_OK")
</pallas_src>

<mosaic_0001>
module attributes {stable_mosaic.version = 11 : i64} {
  func.func @linear_kernel(%arg0: i32, %arg1: i32, %arg2: i32, %arg3: memref<2x2xf32, #tpu.memory_space<vmem>>, %arg4: memref<2x2xf32, #tpu.memory_space<vmem>>, %arg5: memref<1x2xf32, #tpu.memory_space<vmem>>, %arg6: memref<2x2xf32, #tpu.memory_space<vmem>>, %arg7: memref<2x2xf32, #tpu.memory_space<vmem>>) attributes {dimension_semantics = [#tpu.dimension_semantics<parallel>, #tpu.dimension_semantics<parallel>, #tpu.dimension_semantics<arbitrary>], iteration_bounds = array<i64: 1, 1, 1>, scalar_prefetch = 0 : i64, scratch_operands = 1 : i64, tpu.core_type = #tpu.core_type<tc>, window_params = [{transform_indices = @transform_0, window_bounds = array<i64: 2, 2>}, {transform_indices = @transform_1, window_bounds = array<i64: 2, 2>}, {transform_indices = @transform_2, window_bounds = array<i64: 1, 2>}, {transform_indices = @transform_3, window_bounds = array<i64: 2, 2>}]} {
    %c0_i32 = arith.constant 0 : i32
    %0 = arith.cmpi eq, %arg2, %c0_i32 : i32
    %1 = arith.extui %0 : i1 to i32
    %c0_i32_0 = arith.constant 0 : i32
    %2 = arith.cmpi ne, %1, %c0_i32_0 : i32
    scf.if %2 {
      %cst_10 = arith.constant 0.000000e+00 : f32
      %12 = vector.broadcast %cst_10 : f32 to vector<2x2xf32>
      %c0_11 = arith.constant 0 : index
      %c0_12 = arith.constant 0 : index
      %13 = vector.load %arg7[%c0_11, %c0_12] : memref<2x2xf32, #tpu.memory_space<vmem>>, vector<2x2xf32>
      tpu.vector_store %arg7[%c0_11, %c0_12], %12 {strides = array<i32>} : memref<2x2xf32, #tpu.memory_space<vmem>>, vector<2x2xf32>,
    } else {
    }
    %c0 = arith.constant 0 : index
    %c0_1 = arith.constant 0 : index
    %3 = vector.load %arg7[%c0, %c0_1] : memref<2x2xf32, #tpu.memory_space<vmem>>, vector<2x2xf32>
    %c0_2 = arith.constant 0 : index
    %c0_3 = arith.constant 0 : index
    %4 = vector.load %arg3[%c0_2, %c0_3] : memref<2x2xf32, #tpu.memory_space<vmem>>, vector<2x2xf32>
    %c0_4 = arith.constant 0 : index
    %c0_5 = arith.constant 0 : index
    %5 = vector.load %arg4[%c0_4, %c0_5] : memref<2x2xf32, #tpu.memory_space<vmem>>, vector<2x2xf32>
    %cst = arith.constant dense<0.000000e+00> : vector<2x2xf32>
    %6 = tpu.matmul %4, %5, %cst {dimension_numbers = #tpu.dot_dimension_numbers<[1], [0], [0], [1], [0, 0, 1, 1], [], []>} : vector<2x2xf32>, vector<2x2xf32>, vector<2x2xf32> -> vector<2x2xf32>
    %7 = arith.addf %3, %6 : vector<2x2xf32>
    %c0_6 = arith.constant 0 : index
    %c0_7 = arith.constant 0 : index
    %8 = vector.load %arg7[%c0_6, %c0_7] : memref<2x2xf32, #tpu.memory_space<vmem>>, vector<2x2xf32>
    tpu.vector_store %arg7[%c0_6, %c0_7], %7 {strides = array<i32>} : memref<2x2xf32, #tpu.memory_space<vmem>>, vector<2x2xf32>,
    %c0_i32_8 = arith.constant 0 : i32
    %9 = arith.cmpi eq, %arg2, %c0_i32_8 : i32
    %10 = arith.extui %9 : i1 to i32
    %c0_i32_9 = arith.constant 0 : i32
    %11 = arith.cmpi ne, %10, %c0_i32_9 : i32
    scf.if %11 {
      %c0_10 = arith.constant 0 : index
      %c0_11 = arith.constant 0 : index
      %12 = vector.load %arg7[%c0_10, %c0_11] : memref<2x2xf32, #tpu.memory_space<vmem>>, vector<2x2xf32>
      %c0_12 = arith.constant 0 : index
      %c0_13 = arith.constant 0 : index
      %13 = vector.load %arg5[%c0_12, %c0_13] : memref<1x2xf32, #tpu.memory_space<vmem>>, vector<1x2xf32>
      %14 = vector.broadcast %13 : vector<1x2xf32> to vector<2x2xf32>
      %15 = arith.addf %12, %14 : vector<2x2xf32>
      %c0_14 = arith.constant 0 : index
      %c0_15 = arith.constant 0 : index
      %16 = vector.load %arg6[%c0_14, %c0_15] : memref<2x2xf32, #tpu.memory_space<vmem>>, vector<2x2xf32>
      tpu.vector_store %arg6[%c0_14, %c0_15], %15 {strides = array<i32>} : memref<2x2xf32, #tpu.memory_space<vmem>>, vector<2x2xf32>,
    } else {
    }
    return
  }
  func.func @transform_0(%arg0: i32, %arg1: i32, %arg2: i32) -> (i32, i32) {
    %c0_i32 = arith.constant 0 : i32
    return %arg0, %arg2 : i32, i32
  }
  func.func @transform_1(%arg0: i32, %arg1: i32, %arg2: i32) -> (i32, i32) {
    %c0_i32 = arith.constant 0 : i32
    return %arg2, %arg1 : i32, i32
  }
  func.func @transform_2(%arg0: i32, %arg1: i32, %arg2: i32) -> (i32, i32) {
    %c0_i32 = arith.constant 0 : i32
    %c0_i32_0 = arith.constant 0 : i32
    return %c0_i32, %arg1 : i32, i32
  }
  func.func @transform_3(%arg0: i32, %arg1: i32, %arg2: i32) -> (i32, i32) {
    %c0_i32 = arith.constant 0 : i32
    return %arg0, %arg1 : i32, i32
  }
}

</mosaic_0001>

<llo_original>
// kernel: tpu_custom_call.1
$region0: #{tpu_custom_call.1}
  #allocation0 [shape = 'u32[]', space=smem, size = 0x4, offset = 0x4, fixed_abs, tag = 'smem constant byte address 0x4 - core index']
  #allocation1 [shape = 'u32[144,128]{1,0:T(1,128)}', space=vmem, size = 0x12000, scoped, tag = 'internal scratch']
  #allocation2 [shape = 'f32[2,2]{1,0:T(2,128)}', space=vmem, size = 0x400, scoped, tag = 'scratch operand']
  %s0 = inlined_call_operand.hbm [shape: f32[2,2], index: 0, kind: input, shape index: {}]
  %s1 = inlined_call_operand.vmem [shape: f32[2,2], index: 1, kind: input, shape index: {}]
  %s2 = inlined_call_operand.vmem [shape: f32[1,2], index: 2, kind: input, shape index: {}]
  %s3 = inlined_call_operand.hbm [shape: f32[2,2], index: 3, kind: output, shape index: {}]
  %s4 = sld [smem:[#allocation0]]
  $region34: #{tpu_custom_call.1} parent=0
    _
  %s6 = ssub.s32 1, %s4
  %s7 = scalar_select 0, %s6, %s4
  $region1: #{tpu_custom_call.1} parent=0
    #allocation3 [shape = 'u8[1024]{0}', space=vmem, size = 0x400, scoped, tag = 'input window, operand 0, single buffered']
    #allocation4 [shape = 's32[1]{0}', space=sflag, size = 0x4, scoped, tag = 'scoped memory for tpu_custom_call.1']
    #allocation5 [shape = 's32[1]{0}', space=sflag, size = 0x4, scoped, tag = 'scoped memory for tpu_custom_call.1']
    #allocation6 [shape = 'u8[1024]{0}', space=vmem, size = 0x400, scoped, tag = 'output window, operand 0, single buffered']
    %8 = vsyncpa [#allocation4], 0
    %9 = vsyncpa [#allocation5], 0
    // Predicated region
    $region2: #{tpu_custom_call.1} parent=1 // pred_check
      _
    $region3: #{tpu_custom_call.1} parent=1 // pred_check_branch
      %11 = sbr.rel (0) target = $region5
    $region4: #{tpu_custom_call.1} parent=1 // pred_region
      %s13 = ssub.s32 32, 32
      %14 = vsyncadd [#allocation4], %s13
      %s16 = sshll.u32 [#allocation3], 4
      %s17 = int_to_ptr.vmem [resolvable:$true] %s16
      %19 = dma.hbm_to_vmem [thread:$0]  %s0, 32, %s17, [#allocation4]
    $region5: #{tpu_custom_call.1} parent=1 // pred_fallthru
      _
    // Predicated region
    $region6: #{tpu_custom_call.1} parent=1 // pred_check
      _
    $region7: #{tpu_custom_call.1} parent=1 // pred_check_branch
      %21 = sbr.rel (0) target = $region9
    $region8: #{tpu_custom_call.1} parent=1 // pred_region
      _
    $region9: #{tpu_custom_call.1} parent=1 // pred_fallthru
      _
    // Predicated region
    $region10: #{tpu_custom_call.1} parent=1 // pred_check
      _
    $region11: #{tpu_custom_call.1} parent=1 // pred_check_branch
      %23 = sbr.rel (0) target = $region13
    $region12: #{tpu_custom_call.1} parent=1 // pred_region
      _
    $region13: #{tpu_custom_call.1} parent=1 // pred_fallthru
      _
    // Predicated region
    $region14: #{tpu_custom_call.1} parent=1 // pred_check
      _
    $region15: #{tpu_custom_call.1} parent=1 // pred_check_branch
      %25 = sbr.rel (0) target = $region17
    $region16: #{tpu_custom_call.1} parent=1 // pred_region
      %26 = dma.done [#allocation4], 32
    $region17: #{tpu_custom_call.1} parent=1 // pred_fallthru
      _
    %p27 = scmp.eq.s32.totalorder 0, 0
    // Predicated region
    $region18: #{tpu_custom_call.1} parent=1 // pred_check
      %p28 = pneg %p27
    $region19: #{tpu_custom_call.1} parent=1 // pred_check_branch
      %30 = sbr.rel (%p28) target = $region21
    $region20: #{tpu_custom_call.1} parent=1 // pred_region
      %vm31 = vcmask 9216
      %32 = vst.msk [vmem:[#allocation2] sm:$0x3] %vm31, 0.0
    $region21: #{tpu_custom_call.1} parent=1 // pred_fallthru
      _
    %v33 = vld [vmem:[#allocation2] sm:$0x3]
    %v34 = vld [vmem:[#allocation3] sm:$0x3]
    %v35 = vld [vmem:[%s1] sm:$0x3]
    %vm36 = vcmask 15360
    %v38 = vsel %vm36, %v34, 0
    %vm40 = vcmask 1041408
    %v42 = vsel %vm40, %v35, 0
    %44 = vmatprep.subr.mxu0 0.0
    %45 = vmatpush1.msra.mxu0 %v42
    %46 = vmatprep.subr.mxu0 0.0
    %47 = vmatpush1.msra.mxu0 0.0
    %48 = vmatprep.subr.mxu0 0.0
    %49 = vmatpush1.msra.mxu0 0.0
    %50 = vmatprep.subr.mxu0 0.0
    %51 = vmatpush1.msra.mxu0 0.0
    %52 = vmatprep.subr.mxu0 0.0
    %53 = vmatpush1.msra.mxu0 0.0
    %54 = vmatprep.subr.mxu0 0.0
    %55 = vmatpush1.msra.mxu0 0.0
    %56 = vmatprep.subr.mxu0 0.0
    %57 = vmatpush1.msra.mxu0 0.0
    %58 = vmatprep.subr.mxu0 0.0
    %59 = vmatpush1.msra.mxu0 0.0
    %60 = vmatprep.subr.mxu0 0.0
    %61 = vmatpush1.msra.mxu0 0.0
    %62 = vmatprep.subr.mxu0 0.0
    %63 = vmatpush1.msra.mxu0 0.0
    %64 = vmatprep.subr.mxu0 0.0
    %65 = vmatpush1.msra.mxu0 0.0
    %66 = vmatprep.subr.mxu0 0.0
    %67 = vmatpush1.msra.mxu0 0.0
    %68 = vmatprep.subr.mxu0 0.0
    %69 = vmatpush1.msra.mxu0 0.0
    %70 = vmatprep.subr.mxu0 0.0
    %71 = vmatpush1.msra.mxu0 0.0
    %72 = vmatprep.subr.mxu0 0.0
    %73 = vmatpush1.msra.mxu0 0.0
    %74 = vmatprep.subr.mxu0 0.0
    %75 = vmatpush1.msra.mxu0 0.0
    %76 = vmatprep.subr.mxu0 0.0
    %77 = vmatpush1.msra.mxu0 0.0
    %78 = vmatprep.subr.mxu0 0.0
    %79 = vmatpush1.msra.mxu0 0.0
    %80 = vmatprep.subr.mxu0 0.0
    %81 = vmatpush1.msra.mxu0 0.0
    %82 = vmatprep.subr.mxu0 0.0
    %83 = vmatpush1.msra.mxu0 0.0
    %84 = vmatprep.subr.mxu0 0.0
    %85 = vmatpush1.msra.mxu0 0.0
    %86 = vmatprep.subr.mxu0 0.0
    %87 = vmatpush1.msra.mxu0 0.0
    %88 = vmatprep.subr.mxu0 0.0
    %89 = vmatpush1.msra.mxu0 0.0
    %90 = vmatprep.subr.mxu0 0.0
    %91 = vmatpush1.msra.mxu0 0.0
    %92 = vmatprep.subr.mxu0 0.0
    %93 = vmatpush1.msra.mxu0 0.0
    %94 = vmatprep.subr.mxu0 0.0
    %95 = vmatpush1.msra.mxu0 0.0
    %96 = vmatprep.subr.mxu0 0.0
    %97 = vmatpush1.msra.mxu0 0.0
    %98 = vmatprep.subr.mxu0 0.0
    %99 = vmatpush1.msra.mxu0 0.0
    %100 = vmatprep.subr.mxu0 0.0
    %101 = vmatpush1.msra.mxu0 0.0
    %102 = vmatprep.subr.mxu0 0.0
    %103 = vmatpush1.msra.mxu0 0.0
    %104 = vmatprep.subr.mxu0 0.0
    %105 = vmatpush1.msra.mxu0 0.0
    %106 = vmatprep.subr.mxu0 0.0
    %107 = vmatpush1.msra.mxu0 0.0
    %108 = vmatprep.mubr.f32.mxu0 0.0
    %109 = vmatmul.mubr.f32.gmra.mrb[0].mxu0 %v38
    %v110 = vpop.f32.mrb[0].mxu0
    %v111 = vadd.f32 0.0, %v110
    %v112 = vpop.f32.mrb[0].mxu0
    %113 = vdwg.mxu0
    %v114 = vadd.f32 %v33, %v111
    %vm115 = vcmask 9216
    %116 = vst.msk [vmem:[#allocation2] sm:$0x3] %vm115, %v114
    // Predicated region
    $region22: #{tpu_custom_call.1} parent=1 // pred_check
      %p117 = pneg %p27
    $region23: #{tpu_custom_call.1} parent=1 // pred_check_branch
      %119 = sbr.rel (%p117) target = $region25
    $region24: #{tpu_custom_call.1} parent=1 // pred_region
      %v120 = vld [vmem:[#allocation2] sm:$0x3]
      %v121 = vld [vmem:[%s2] sm:$0x1]
      %v123 = vlaneseq
      %v124 = vshrl.u32 %v123, 7
      %v125 = vsub.s32 0, %v124
      %v126 = vrot.slane %v121, %v125
      %v128 = vadd.f32 %v120, %v126
      %129 = vst.msk [vmem:[#allocation6] sm:$0x3] %vm115, %v128
    $region25: #{tpu_custom_call.1} parent=1 // pred_fallthru
      _
    // Predicated region
    $region26: #{tpu_custom_call.1} parent=1 // pred_check
      _
    $region27: #{tpu_custom_call.1} parent=1 // pred_check_branch
      %131 = sbr.rel (0) target = $region29
    $region28: #{tpu_custom_call.1} parent=1 // pred_region
      %s133 = ssub.s32 32, 32
      %134 = vsyncadd [#allocation5], %s133
      %s136 = sshll.u32 [#allocation6], 4
      %s137 = int_to_ptr.vmem [resolvable:$true] %s136
      %139 = dma.vmem_to_hbm [thread:$0]  %s137, 32, %s3, [#allocation5]
    $region29: #{tpu_custom_call.1} parent=1 // pred_fallthru
      _
    // Predicated region
    $region30: #{tpu_custom_call.1} parent=1 // pred_check
      _
    $region31: #{tpu_custom_call.1} parent=1 // pred_check_branch
      %141 = sbr.rel (0) target = $region33
    $region32: #{tpu_custom_call.1} parent=1 // pred_region
      %142 = dma.done [#allocation5], 32
    $region33: #{tpu_custom_call.1} parent=1 // pred_fallthru
      _
    %143 = vsyncpa [#allocation4], 1
    %144 = vsyncpa [#allocation5], 1

</llo_original>
